<compile_context>
chip_gen: v7x
topology: tpu7x:2x2x1
jax: 0.10.0
libtpu: 0.0.40
codegen_flags: <defaults>
</compile_context>

<pallas_src>
import functools
import math

import jax
import jax.numpy as jnp
from jax.experimental import pallas as pl
from jax.experimental.pallas import tpu as pltpu


# ----------------------------------------------------------------------------
# helpers
# ----------------------------------------------------------------------------
def _vmem_limit_bytes():
    """Raise the scoped-VMEM limit on 128 MiB parts, stay conservative on 64 MiB."""
    try:
        kind = jax.devices()[0].device_kind.lower()
    except Exception:
        kind = ""
    if "v5" in kind or "v6" in kind:      # 128 MiB physical VMEM generations
        return 96 * 1024 * 1024
    return 48 * 1024 * 1024               # safe on 64 MiB parts (v7x)


_VMEM_LIMIT = _vmem_limit_bytes()


def _pick_rows(m, candidates=(2048, 1024, 512, 256, 128, 64, 32, 16, 8)):
    """Largest divisor tile that still leaves >=2 grid steps (feeds both TCs)."""
    for c in candidates:
        if m % c == 0 and m // c >= 2:
            return c
    for c in candidates:
        if m % c == 0:
            return c
    return m


def _pick_attn_tile(n, parallel_steps=2, candidates=(512, 256, 128, 64, 32, 16, 8)):
    """Largest divisor tile; if the other parallel axes give <2 steps, prefer >=2."""
    if parallel_steps < 2:
        for c in candidates:
            if n % c == 0 and n // c >= 2:
                return c
    for c in candidates:
        if n % c == 0:
            return c
    return n


# ----------------------------------------------------------------------------
# Kernels
# ----------------------------------------------------------------------------
def _rmsnorm_qkv_kernel(x_ref, w_ref, b_ref, q_ref, kv_ref, *, emb):
    """Per-token RMSNorm (over channels) + fused qkv / in-proj matmul.

    RMSNorm gain * sqrt(C) is pre-folded into the rows of w_ref and the
    1/sqrt(head_dim) attention scale into its q columns, so the kernel only
    normalizes and issues one MXU matmul.  Emits bf16 q and bf16 [k|v].
    """
    x = x_ref[...]                                        # (tm, C) f32
    sumsq = jnp.sum(x * x, axis=-1, keepdims=True)
    # F.normalize(x, dim=C, eps=1e-12)  ==  x * rsqrt(max(sumsq, 1e-24))
    inv = jax.lax.rsqrt(jnp.maximum(sumsq, 1e-24))
    xn = (x * inv).astype(jnp.bfloat16)
    out = jnp.dot(xn, w_ref[...],
                  preferred_element_type=jnp.float32) + b_ref[...]   # (tm, 3E)
    q_ref[...] = out[:, :emb].astype(q_ref.dtype)         # (tm, E)  bf16
    kv_ref[...] = out[:, emb:].astype(kv_ref.dtype)       # (tm, 2E) bf16


def _flash_attn_outproj_kernel(q_ref, kv_ref, w_ref, b_ref, o_ref,
                               m_sc, l_sc, acc_sc, *, heads, dh, emb):
    """Online-softmax attention + fused output projection.

    Grid: (batch, q_tiles, kv_tiles), kv last ('arbitrary' reduction axis).
    Scratch (all full-width, (tq, E) f32):
      m_sc   running max per head, broadcast across that head's dh lanes
      l_sc   running softmax denominator
      acc_sc running numerator
    All scratch stores are full-width; per-head pieces are assembled at the
    value level with lane masks (no masked sub-128-lane vst's).
    """
    kv_i = pl.program_id(2)

    @pl.when(kv_i == 0)
    def _init():
        m_sc[...] = jnp.full(m_sc.shape, -jnp.inf, jnp.float32)
        l_sc[...] = jnp.zeros(l_sc.shape, jnp.float32)
        acc_sc[...] = jnp.zeros(acc_sc.shape, jnp.float32)

    q = q_ref[0]                       # (tq, E) bf16, pre-scaled by 1/sqrt(dh)
    kvb = kv_ref[0]                    # (tk, 2E) bf16
    k = kvb[:, :emb]                   # (tk, E)
    v = kvb[:, emb:]                   # (tk, E)

    lane = jax.lax.broadcasted_iota(jnp.int32, (1, emb), 1)     # (1, E)

    m_prev = m_sc[...]                 # (tq, E)
    m_new = m_prev
    rowsum = jnp.zeros(m_prev.shape, jnp.float32)
    pv = jnp.zeros(m_prev.shape, jnp.float32)

    for h in range(heads):             # small static unroll
        mask = (lane >= h * dh) & (lane < (h + 1) * dh)         # (1, E)
        # zero the other heads' lanes of q, then contract over the full E axis:
        # this yields exactly q_h . k_h without narrow per-head matmuls.
        qh = jnp.where(mask, q, jnp.zeros_like(q))              # (tq, E) bf16
        s = jax.lax.dot_general(qh, k, (((1,), (1,)), ((), ())),
                                preferred_element_type=jnp.float32)   # (tq, tk)

        m_prev_h = m_prev[:, h * dh:h * dh + 1]                 # (tq, 1)
        m_new_h = jnp.maximum(m_prev_h, jnp.max(s, axis=-1, keepdims=True))
        p = jnp.exp(s - m_new_h)                                # (tq, tk) f32
        rowsum_h = jnp.sum(p, axis=-1, keepdims=True)           # (tq, 1)

        vh = jnp.where(mask, v, jnp.zeros_like(v))              # (tk, E) bf16
        pv = pv + jax.lax.dot_general(p.astype(jnp.bfloat16), vh,
                                      (((1,), (0,)), ((), ())),
                                      preferred_element_type=jnp.float32)

        m_new = jnp.where(mask, m_new_h, m_new)                 # place head h lanes
        rowsum = jnp.where(mask, rowsum_h, rowsum)

    alpha = jnp.exp(m_prev - m_new)                             # (tq, E)
    l_sc[...] = alpha * l_sc[...] + rowsum
    acc_sc[...] = alpha * acc_sc[...] + pv
    m_sc[...] = m_new

    # TODO(synk): attention dropout omitted (eval / inference semantics).
    @pl.when(kv_i == pl.num_programs(2) - 1)
    def _finalize():
        o = acc_sc[...] * pl.reciprocal(l_sc[...], approx=False)        # (tq, E)
        # fused (out_proj ∘ to_out) projection, written channel-major so the
        # token axis stays lane-dense: (C, tq)
        proj = jax.lax.dot_general(w_ref[...], o.astype(jnp.bfloat16),
                                   (((1,), (1,)), ((), ())),
                                   preferred_element_type=jnp.float32)  # (C, tq)
        o_ref[0] = (proj + b_ref[...]).astype(o_ref.dtype)


# ----------------------------------------------------------------------------
# pallas_call wrappers
# ----------------------------------------------------------------------------
def _rmsnorm_qkv(x2d, w_in_bf16, b_in, emb):
    M, C = x2d.shape
    three_e = w_in_bf16.shape[1]
    tm = _pick_rows(M)
    kernel = functools.partial(_rmsnorm_qkv_kernel, emb=emb)
    return pl.pallas_call(
        kernel,
        out_shape=(
            jax.ShapeDtypeStruct((M, emb), jnp.bfloat16),
            jax.ShapeDtypeStruct((M, 2 * emb), jnp.bfloat16),
        ),
        grid=(M // tm,),
        in_specs=[
            pl.BlockSpec((tm, C), lambda i: (i, 0)),
            pl.BlockSpec((C, three_e), lambda i: (0, 0)),
            pl.BlockSpec((1, three_e), lambda i: (0, 0)),
        ],
        out_specs=[
            pl.BlockSpec((tm, emb), lambda i: (i, 0)),
            pl.BlockSpec((tm, 2 * emb), lambda i: (i, 0)),
        ],
        compiler_params=pltpu.CompilerParams(
            dimension_semantics=("parallel",),
            vmem_limit_bytes=_VMEM_LIMIT,
        ),
    )(x2d, w_in_bf16, b_in.reshape(1, three_e))


def _flash_mha_outproj(q, kv, w_out_ct, b_out_col, heads):
    B, N, E = q.shape
    Cout = w_out_ct.shape[0]
    dh = E // heads
    tq = _pick_attn_tile(N, parallel_steps=B)   # ensure >=2 parallel grid steps
    tk = _pick_attn_tile(N, parallel_steps=2)   # kv axis is a serial reduction
    kernel = functools.partial(_flash_attn_outproj_kernel,
                               heads=heads, dh=dh, emb=E)
    return pl.pallas_call(
        kernel,
        out_shape=jax.ShapeDtypeStruct((B, Cout, N), jnp.float32),
        grid_spec=pltpu.PrefetchScalarGridSpec(
            num_scalar_prefetch=0,
            grid=(B, N // tq, N // tk),
            in_specs=[
                pl.BlockSpec((1, tq, E), lambda b, i, j: (b, i, 0)),
                pl.BlockSpec((1, tk, 2 * E), lambda b, i, j: (b, j, 0)),
                pl.BlockSpec((Cout, E), lambda b, i, j: (0, 0)),
                pl.BlockSpec((Cout, 1), lambda b, i, j: (0, 0)),
            ],
            out_specs=pl.BlockSpec((1, Cout, tq), lambda b, i, j: (b, 0, i)),
            scratch_shapes=[
                pltpu.VMEM((tq, E), jnp.float32),   # running max (head-broadcast)
                pltpu.VMEM((tq, E), jnp.float32),   # running denominator
                pltpu.VMEM((tq, E), jnp.float32),   # running numerator
            ],
        ),
        compiler_params=pltpu.CompilerParams(
            dimension_semantics=("parallel", "parallel", "arbitrary"),
            vmem_limit_bytes=_VMEM_LIMIT,
        ),
    )(q, kv, w_out_ct, b_out_col)


# ----------------------------------------------------------------------------
# Module: parameter init + forward
# ----------------------------------------------------------------------------
def init_attention_params(key, dim_in, attn_emb_dim):
    """Deterministic synthetic parameters mirroring the PyTorch module shapes."""
    E = attn_emb_dim
    ks = jax.random.split(key, 8)
    std = 0.05

    def w(k, shape):
        return jax.random.normal(k, shape, jnp.float32) * std

    return {
        # RMSNorm gain (PyTorch shape (1, dim_in, 1, 1) -> (dim_in,))
        "g": jnp.ones((dim_in,), jnp.float32),
        # qkv 1x1 conv: weight (3E, dim_in, 1, 1) -> (dim_in, 3E), bias (3E,)
        "w_qkv": w(ks[0], (dim_in, 3 * E)),
        "b_qkv": w(ks[1], (3 * E,)),
        # nn.MultiheadAttention in_proj, stored transposed (x @ w convention)
        "w_q": w(ks[2], (E, E)),
        "b_q": w(ks[3], (E,)),
        "w_k": w(ks[4], (E, E)),
        "b_k": w(ks[5], (E,)),
        "w_v": w(ks[6], (E, E)),
        "b_v": w(ks[7], (E,)),
        # MHA out_proj Linear(E, E)
        "w_out_proj": w(jax.random.fold_in(key, 100), (E, E)),
        "b_out_proj": w(jax.random.fold_in(key, 101), (E,)),
        # to_out 1x1 conv: weight (dim_in, E, 1, 1) -> (E, dim_in), bias (dim_in,)
        "w_to_out": w(jax.random.fold_in(key, 102), (E, dim_in)),
        "b_to_out": w(jax.random.fold_in(key, 103), (dim_in,)),
    }


def attention_forward(x, params, attn_heads):
    """x: (B, C, H, W) float32 (NCHW, matching the PyTorch module)."""
    b, c, h, w = x.shape
    N = h * w
    E = params["w_q"].shape[0]
    assert E % attn_heads == 0
    dh = E // attn_heads

    # ---- one-time weight folds (tiny, plain JAX) ---------------------------
    w_qkv, b_qkv = params["w_qkv"], params["b_qkv"]
    wq = w_qkv[:, :E] @ params["w_q"]
    wk = w_qkv[:, E:2 * E] @ params["w_k"]
    wv = w_qkv[:, 2 * E:] @ params["w_v"]
    bq = b_qkv[:E] @ params["w_q"] + params["b_q"]
    bk = b_qkv[E:2 * E] @ params["w_k"] + params["b_k"]
    bv = b_qkv[2 * E:] @ params["w_v"] + params["b_v"]

    scale = 1.0 / math.sqrt(dh)                 # attention scale folded into q
    wq = wq * scale
    bq = bq * scale

    w_in = jnp.concatenate([wq, wk, wv], axis=1)                # (C, 3E)
    w_in = w_in * (params["g"] * math.sqrt(c))[:, None]         # fold RMSNorm gain
    w_in = w_in.astype(jnp.bfloat16)
    b_in = jnp.concatenate([bq, bk, bv]).astype(jnp.float32)    # (3E,)

    w_out = params["w_out_proj"] @ params["w_to_out"]           # (E, C)
    b_out = params["b_out_proj"] @ params["w_to_out"] + params["b_to_out"]
    w_out_ct = jnp.transpose(w_out).astype(jnp.bfloat16)        # (C, E)
    b_out_col = b_out.reshape(c, 1).astype(jnp.float32)         # (C, 1)

    # NCHW -> token-major (B*H*W, C)
    x_tok = jnp.transpose(x, (0, 2, 3, 1)).reshape(b * N, c).astype(jnp.float32)

    # fused RMSNorm + (qkv conv ∘ MHA in-proj); bf16 q and [k|v] slabs
    q2, kv2 = _rmsnorm_qkv(x_tok, w_in, b_in, E)
    q3 = q2.reshape(b, N, E)
    kv3 = kv2.reshape(b, N, 2 * E)

    # flash attention + fused (out_proj ∘ to_out); channel-major (B, C, N) out
    o_cn = _flash_mha_outproj(q3, kv3, w_out_ct, b_out_col, attn_heads)

    # channel-major tokens -> NCHW (pure reshape, no transpose needed)
    return o_cn.reshape(b, c, h, w)


# ----------------------------------------------------------------------------
if __name__ == "__main__":
    dim_in = 4
    attn_emb_dim = 32
    attn_heads = 4
    B, H, W = 2, 16, 16

    key = jax.random.PRNGKey(0)
    k_x, k_p = jax.random.split(key)
    x = jax.random.normal(k_x, (B, dim_in, H, W), jnp.float32)
    params = init_attention_params(k_p, dim_in, attn_emb_dim)

    out = attention_forward(x, params, attn_heads)
    jax.block_until_ready(out)
    assert out.shape == (B, dim_in, H, W), out.shape
    assert out.dtype == jnp.float32
    assert bool(jnp.isfinite(out).all())
    print("KERNEL_OK")
</pallas_src>

<mosaic_0001>
module attributes {stable_mosaic.version = 11 : i64} {
  func.func @_rmsnorm_qkv_kernel(%arg0: i32, %arg1: memref<256x4xf32, #tpu.memory_space<vmem>>, %arg2: memref<4x96xbf16, #tpu.memory_space<vmem>>, %arg3: memref<1x96xf32, #tpu.memory_space<vmem>>, %arg4: memref<256x32xbf16, #tpu.memory_space<vmem>>, %arg5: memref<256x64xbf16, #tpu.memory_space<vmem>>) attributes {dimension_semantics = [#tpu.dimension_semantics<parallel>], iteration_bounds = array<i64: 2>, scalar_prefetch = 0 : i64, scratch_operands = 0 : i64, tpu.core_type = #tpu.core_type<tc>, window_params = [{transform_indices = @transform_0, window_bounds = array<i64: 256, 4>}, {pipeline_mode = #tpu.pipeline_mode<synchronous>, transform_indices = @transform_1, window_bounds = array<i64: 4, 96>}, {pipeline_mode = #tpu.pipeline_mode<synchronous>, transform_indices = @transform_2, window_bounds = array<i64: 1, 96>}, {transform_indices = @transform_3, window_bounds = array<i64: 256, 32>}, {transform_indices = @transform_4, window_bounds = array<i64: 256, 64>}]} {
    %c0 = arith.constant 0 : index
    %c0_0 = arith.constant 0 : index
    %0 = vector.load %arg1[%c0, %c0_0] : memref<256x4xf32, #tpu.memory_space<vmem>>, vector<256x4xf32>
    %1 = arith.mulf %0, %0 : vector<256x4xf32>
    %cst = arith.constant dense<0.000000e+00> : vector<256xf32>
    %2 = vector.multi_reduction <add>, %1, %cst [1] : vector<256x4xf32> to vector<256xf32>
    %3 = vector.shape_cast %2 : vector<256xf32> to vector<256x1xf32>
    %cst_1 = arith.constant 1.000000e-24 : f32
    %4 = vector.broadcast %cst_1 : f32 to vector<256x1xf32>
    %5 = arith.maximumf %3, %4 : vector<256x1xf32>
    %6 = math.rsqrt %5 : vector<256x1xf32>
    %7 = vector.broadcast %6 : vector<256x1xf32> to vector<256x4xf32>
    %8 = arith.mulf %0, %7 : vector<256x4xf32>
    %9 = arith.truncf %8 : vector<256x4xf32> to vector<256x4xbf16>
    %c0_2 = arith.constant 0 : index
    %c0_3 = arith.constant 0 : index
    %10 = vector.load %arg2[%c0_2, %c0_3] : memref<4x96xbf16, #tpu.memory_space<vmem>>, vector<4x96xbf16>
    %cst_4 = arith.constant dense<0.000000e+00> : vector<256x96xf32>
    %11 = tpu.matmul %9, %10, %cst_4 {dimension_numbers = #tpu.dot_dimension_numbers<[1], [0], [0], [1], [0, 0, 1, 1], [], []>} : vector<256x4xbf16>, vector<4x96xbf16>, vector<256x96xf32> -> vector<256x96xf32>
    %c0_5 = arith.constant 0 : index
    %c0_6 = arith.constant 0 : index
    %12 = vector.load %arg3[%c0_5, %c0_6] : memref<1x96xf32, #tpu.memory_space<vmem>>, vector<1x96xf32>
    %13 = vector.broadcast %12 : vector<1x96xf32> to vector<256x96xf32>
    %14 = arith.addf %11, %13 : vector<256x96xf32>
    %15 = vector.extract_strided_slice %14 {offsets = [0, 0], sizes = [256, 32], strides = [1, 1]} : vector<256x96xf32> to vector<256x32xf32>
    %16 = arith.truncf %15 : vector<256x32xf32> to vector<256x32xbf16>
    %c0_7 = arith.constant 0 : index
    %c0_8 = arith.constant 0 : index
    %17 = vector.load %arg4[%c0_7, %c0_8] : memref<256x32xbf16, #tpu.memory_space<vmem>>, vector<256x32xbf16>
    tpu.vector_store %arg4[%c0_7, %c0_8], %16 {strides = array<i32>} : memref<256x32xbf16, #tpu.memory_space<vmem>>, vector<256x32xbf16>,
    %18 = vector.extract_strided_slice %14 {offsets = [0, 32], sizes = [256, 64], strides = [1, 1]} : vector<256x96xf32> to vector<256x64xf32>
    %19 = arith.truncf %18 : vector<256x64xf32> to vector<256x64xbf16>
    %c0_9 = arith.constant 0 : index
    %c0_10 = arith.constant 0 : index
    %20 = vector.load %arg5[%c0_9, %c0_10] : memref<256x64xbf16, #tpu.memory_space<vmem>>, vector<256x64xbf16>
    tpu.vector_store %arg5[%c0_9, %c0_10], %19 {strides = array<i32>} : memref<256x64xbf16, #tpu.memory_space<vmem>>, vector<256x64xbf16>,
    return
  }
  func.func @transform_0(%arg0: i32) -> (i32, i32) {
    %c0_i32 = arith.constant 0 : i32
    %c0_i32_0 = arith.constant 0 : i32
    return %arg0, %c0_i32 : i32, i32
  }
  func.func @transform_1(%arg0: i32) -> (i32, i32) {
    %c0_i32 = arith.constant 0 : i32
    %c0_i32_0 = arith.constant 0 : i32
    %c0_i32_1 = arith.constant 0 : i32
    return %c0_i32, %c0_i32_0 : i32, i32
  }
  func.func @transform_2(%arg0: i32) -> (i32, i32) {
    %c0_i32 = arith.constant 0 : i32
    %c0_i32_0 = arith.constant 0 : i32
    %c0_i32_1 = arith.constant 0 : i32
    return %c0_i32, %c0_i32_0 : i32, i32
  }
  func.func @transform_3(%arg0: i32) -> (i32, i32) {
    %c0_i32 = arith.constant 0 : i32
    %c0_i32_0 = arith.constant 0 : i32
    return %arg0, %c0_i32 : i32, i32
  }
  func.func @transform_4(%arg0: i32) -> (i32, i32) {
    %c0_i32 = arith.constant 0 : i32
    %c0_i32_0 = arith.constant 0 : i32
    return %arg0, %c0_i32 : i32, i32
  }
}

</mosaic_0001>

<llo_original>
// kernel: tpu_custom_call.1
$region0: #{tpu_custom_call.1}
  #allocation0 [shape = 'u32[]', space=smem, size = 0x4, offset = 0x4, fixed_abs, tag = 'smem constant byte address 0x4 - core index']
  #allocation1 [shape = 'u32[144,128]{1,0:T(1,128)}', space=vmem, size = 0x12000, scoped, tag = 'internal scratch']
  %s0 = inlined_call_operand.vmem [shape: f32[512,4], index: 0, kind: input, shape index: {}]
  %s1 = inlined_call_operand.vmem [shape: bf16[4,96], index: 1, kind: input, shape index: {}]
  %s2 = inlined_call_operand.vmem [shape: f32[1,96], index: 2, kind: input, shape index: {}]
  %s3 = inlined_call_operand.vmem [shape: bf16[512,32], index: 3, kind: output, shape index: {0}]
  %s4 = inlined_call_operand.vmem [shape: bf16[512,64], index: 4, kind: output, shape index: {1}]
  %5 = xla_tuple %s3, %s4
  %s6 = sld [smem:[#allocation0]]
  $region53: #{tpu_custom_call.1} parent=0
    _
  %s8 = ssub.s32 1, %s6
  %s9 = scalar_select 0, %s8, %s6
  loop: start=0, step=1, limit=4
  $region2: #{tpu_custom_call.1} parent=0 // loop_pre_header
    _
  $region3: #{tpu_custom_call.1} parent=0 // loop_header
    %s11 = sphi 0, %s15
    %p12 = scmp.ge.s32.totalorder %s11, 4
    %s21 = sphi 0, %s23
    %s24 = sphi 0, %s21
    %s25 = sphi 0, %s24
    %s41 = sphi 0, %s25
    %s45 = sphi 0, %s45
    %s47 = sphi 0, %s45
    %s48 = sphi 0, %s47
    %s62 = sphi 0, %s48
    %s66 = sphi 0, %s66
    %s68 = sphi 0, %s66
    %s69 = sphi 0, %s68
    %s83 = sphi 0, %s69
    %s89 = sphi 0, %s91
    %s92 = sphi 0, %s89
    %s93 = sphi 0, %s92
    %s109 = sphi 0, %s93
    %s115 = sphi 0, %s117
    %s118 = sphi 0, %s115
    %s119 = sphi 0, %s118
    %s135 = sphi 0, %s119
  $region4: #{tpu_custom_call.1} parent=0 // loop_header_branch
    %14 = sbr.rel (%p12) target = $region8
  $region5: #{tpu_custom_call.1} parent=0 // loop_body
    %s16 = ssub.s32 %s11, 1
    %s17 = ssub.s32 %s11, 2
    %s18 = sadd.s32 %s11, 1
    %s19 = ssub.s32 %s11, %s18
    %p20 = scmp.eq.s32.totalorder %s19, 0
    %s22 = sadd.s32 %s21, 1
    %s23 = scalar_select %p20, %s21, %s22
    %p26 = pneg %p20
    %p27 = scmp.eq.s32.totalorder %s11, 1
    %p28 = por %p26, %p27
    %p29 = scmp.ne.s32.totalorder %s21, %s24
    %p30 = scmp.eq.s32.totalorder %s11, 0
    %p31 = por %p29, %p30
    %p32 = scmp.ne.s32.totalorder %s21, %s24
    %p33 = scmp.eq.s32.totalorder %s16, 1
    %p34 = por %p32, %p33
    %p35 = scmp.ne.s32.totalorder %s24, %s25
    %p36 = scmp.eq.s32.totalorder %s16, 0
    %p37 = por %p35, %p36
    %p38 = scmp.ne.s32.totalorder %s24, %s25
    %p39 = scmp.eq.s32.totalorder %s17, 1
    %p40 = por %p38, %p39
    %p42 = scmp.ne.s32.totalorder %s25, %s41
    %p43 = scmp.eq.s32.totalorder %s17, 0
    %p44 = por %p42, %p43
    %s46 = sadd.s32 %s45, 1
    %p49 = scmp.eq.s32.totalorder %s11, 1
    %p50 = scmp.ne.s32.totalorder %s45, %s47
    %p51 = scmp.eq.s32.totalorder %s11, 0
    %p52 = por %p50, %p51
    %p53 = scmp.ne.s32.totalorder %s45, %s47
    %p54 = scmp.eq.s32.totalorder %s16, 1
    %p55 = por %p53, %p54
    %p56 = scmp.ne.s32.totalorder %s47, %s48
    %p57 = scmp.eq.s32.totalorder %s16, 0
    %p58 = por %p56, %p57
    %p59 = scmp.ne.s32.totalorder %s47, %s48
    %p60 = scmp.eq.s32.totalorder %s17, 1
    %p61 = por %p59, %p60
    %p63 = scmp.ne.s32.totalorder %s48, %s62
    %p64 = scmp.eq.s32.totalorder %s17, 0
    %p65 = por %p63, %p64
    %s67 = sadd.s32 %s66, 1
    %p70 = scmp.eq.s32.totalorder %s11, 1
    %p71 = scmp.ne.s32.totalorder %s66, %s68
    %p72 = scmp.eq.s32.totalorder %s11, 0
    %p73 = por %p71, %p72
    %p74 = scmp.ne.s32.totalorder %s66, %s68
    %p75 = scmp.eq.s32.totalorder %s16, 1
    %p76 = por %p74, %p75
    %p77 = scmp.ne.s32.totalorder %s68, %s69
    %p78 = scmp.eq.s32.totalorder %s16, 0
    %p79 = por %p77, %p78
    %p80 = scmp.ne.s32.totalorder %s68, %s69
    %p81 = scmp.eq.s32.totalorder %s17, 1
    %p82 = por %p80, %p81
    %p84 = scmp.ne.s32.totalorder %s69, %s83
    %p85 = scmp.eq.s32.totalorder %s17, 0
    %p86 = por %p84, %p85
    %s87 = ssub.s32 %s11, %s18
    %p88 = scmp.eq.s32.totalorder %s87, 0
    %s90 = sadd.s32 %s89, 1
    %s91 = scalar_select %p88, %s89, %s90
    %p94 = pneg %p88
    %p95 = scmp.eq.s32.totalorder %s11, 1
    %p96 = por %p94, %p95
    %p97 = scmp.ne.s32.totalorder %s89, %s92
    %p98 = scmp.eq.s32.totalorder %s11, 0
    %p99 = por %p97, %p98
    %p100 = scmp.ne.s32.totalorder %s89, %s92
    %p101 = scmp.eq.s32.totalorder %s16, 1
    %p102 = por %p100, %p101
    %p103 = scmp.ne.s32.totalorder %s92, %s93
    %p104 = scmp.eq.s32.totalorder %s16, 0
    %p105 = por %p103, %p104
    %p106 = scmp.ne.s32.totalorder %s92, %s93
    %p107 = scmp.eq.s32.totalorder %s17, 1
    %p108 = por %p106, %p107
    %p110 = scmp.ne.s32.totalorder %s93, %s109
    %p111 = scmp.eq.s32.totalorder %s17, 0
    %p112 = por %p110, %p111
    %s113 = ssub.s32 %s11, %s18
    %p114 = scmp.eq.s32.totalorder %s113, 0
    %s116 = sadd.s32 %s115, 1
    %s117 = scalar_select %p114, %s115, %s116
    %p120 = pneg %p114
    %p121 = scmp.eq.s32.totalorder %s11, 1
    %p122 = por %p120, %p121
    %p123 = scmp.ne.s32.totalorder %s115, %s118
    %p124 = scmp.eq.s32.totalorder %s11, 0
    %p125 = por %p123, %p124
    %p126 = scmp.ne.s32.totalorder %s115, %s118
    %p127 = scmp.eq.s32.totalorder %s16, 1
    %p128 = por %p126, %p127
    %p129 = scmp.ne.s32.totalorder %s118, %s119
    %p130 = scmp.eq.s32.totalorder %s16, 0
    %p131 = por %p129, %p130
    %p132 = scmp.ne.s32.totalorder %s118, %s119
    %p133 = scmp.eq.s32.totalorder %s17, 1
    %p134 = por %p132, %p133
    %p136 = scmp.ne.s32.totalorder %s119, %s135
    %p137 = scmp.eq.s32.totalorder %s17, 0
    %p138 = por %p136, %p137
    %p139 = scmp.le.s32.totalorder 1, %s11
    %p140 = scmp.lt.s32.totalorder %s11, 3
    %p141 = pnand %p139, %p140
    %p142 = pneg %p141
    // Predicated region
    $region9: #{tpu_custom_call.1} parent=5 // pred_check
      _
    $region10: #{tpu_custom_call.1} parent=5 // pred_check_branch
      %144 = sbr.rel (%p141) target = $region12
    $region11: #{tpu_custom_call.1} parent=5 // pred_region
      %s145 = ssub.s32 %s11, 1
      // Predicated region
      $region13: #{tpu_custom_call.1} parent=11 // pred_check
        %p146 = pneg %p58
      $region14: #{tpu_custom_call.1} parent=11 // pred_check_branch
        %148 = sbr.rel (%p146) target = $region16
      $region15: #{tpu_custom_call.1} parent=11 // pred_region
        _
      $region16: #{tpu_custom_call.1} parent=11 // pred_fallthru
        _
      // Predicated region
      $region17: #{tpu_custom_call.1} parent=11 // pred_check
        %p149 = pneg %p79
      $region18: #{tpu_custom_call.1} parent=11 // pred_check_branch
        %151 = sbr.rel (%p149) target = $region20
      $region19: #{tpu_custom_call.1} parent=11 // pred_region
        _
      $region20: #{tpu_custom_call.1} parent=11 // pred_fallthru
        _
    $region12: #{tpu_custom_call.1} parent=5 // pred_fallthru
      _
    %p152 = scmp.lt.s32.totalorder %s11, 2
    // Predicated region
    $region21: #{tpu_custom_call.1} parent=5 // pred_check
      %p153 = pneg %p152
    $region22: #{tpu_custom_call.1} parent=5 // pred_check_branch
      %155 = sbr.rel (%p153) target = $region24
    $region23: #{tpu_custom_call.1} parent=5 // pred_region
      // Predicated region
      $region25: #{tpu_custom_call.1} parent=23 // pred_check
        %p156 = pneg %p31
      $region26: #{tpu_custom_call.1} parent=23 // pred_check_branch
        %158 = sbr.rel (%p156) target = $region28
      $region27: #{tpu_custom_call.1} parent=23 // pred_region
        %s159 = smul.u32 32, %s11
        %p160 = scmp.lt.s32.totalorder %s159, 63
        %s161 = scalar_select %p160, %s159, 63
        %s162 = smul.addr %s161, 8
        %s163 = scalar_lea.vmem %s0, %s162
        %s164 = smul.u32 32, %s11
      $region28: #{tpu_custom_call.1} parent=23 // pred_fallthru
        _
    $region24: #{tpu_custom_call.1} parent=5 // pred_fallthru
      _
    %p165 = scmp.le.s32.totalorder 1, %s11
    %p166 = scmp.lt.s32.totalorder %s11, 3
    %p167 = pnand %p165, %p166
    %p168 = pneg %p167
    // Predicated region
    $region29: #{tpu_custom_call.1} parent=5 // pred_check
      _
    $region30: #{tpu_custom_call.1} parent=5 // pred_check_branch
      %170 = sbr.rel (%p167) target = $region32
    $region31: #{tpu_custom_call.1} parent=5 // pred_region
      %s171 = ssub.s32 %s11, 1
      %s172 = smul.u32 32, %s16
      %p173 = scmp.lt.s32.totalorder %s172, 63
      %s174 = scalar_select %p173, %s172, 63
      %s175 = smul.addr %s174, 8
      %s176 = scalar_lea.vmem %s0, %s175
      %p177 = pneg %p37
      %p178 = pneg %p34
      %p179 = pneg %p58
      %p180 = pneg %p55
      %p181 = pneg %p79
      %p182 = pneg %p76
      %p183 = pneg %p105
      %p184 = pneg %p102
      %s185 = smul.u32 32, %s16
      %p186 = scmp.lt.s32.totalorder %s185, 63
      %s187 = scalar_select %p186, %s185, 63
      %s188 = smul.addr %s187, 4
      %s189 = scalar_lea.vmem %s3, %s188
      %p190 = pneg %p131
      %p191 = pneg %p128
      %s192 = smul.u32 32, %s16
      %p193 = scmp.lt.s32.totalorder %s192, 63
      %s194 = scalar_select %p193, %s192, 63
      %s195 = smul.addr %s194, 4
      %s196 = scalar_lea.vmem %s4, %s195
      %s197 = smul.u32 32, %s16
      %p198 = scmp.lt.s32.totalorder %s197, 63
      %s199 = scalar_select %p198, %s197, 63
      %s200 = smul.addr %s199, 8
      %s201 = scalar_lea.vmem %s0, %s200
      %s202 = smul.u32 32, %s16
      %s203 = smul.u32 32, %s16
      %p204 = scmp.lt.s32.totalorder %s203, 63
      %s205 = scalar_select %p204, %s203, 63
      %s206 = smul.addr %s205, 4
      %s207 = scalar_lea.vmem %s3, %s206
      %s208 = smul.u32 32, %s16
      %s209 = smul.u32 32, %s16
      %p210 = scmp.lt.s32.totalorder %s209, 63
      %s211 = scalar_select %p210, %s209, 63
      %s212 = smul.addr %s211, 4
      %s213 = scalar_lea.vmem %s4, %s212
      %s214 = smul.u32 32, %s16
      %v216 = vld [vmem:[%s201] sm:$0xff]
      %v217 = vld [vmem:[%s201 + $0x8] sm:$0xff]
      %v218 = vld [vmem:[%s201 + $0x10] sm:$0xff]
      %v219 = vld [vmem:[%s201 + $0x18] sm:$0xff]
      %v220 = vld [vmem:[%s201 + $0x20] sm:$0xff]
      %v221 = vld [vmem:[%s201 + $0x28] sm:$0xff]
      %v222 = vld [vmem:[%s201 + $0x30] sm:$0xff]
      %v223 = vld [vmem:[%s201 + $0x38] sm:$0xff]
      %v224 = vld [vmem:[%s201 + $0x40] sm:$0xff]
      %v225 = vld [vmem:[%s201 + $0x48] sm:$0xff]
      %v226 = vld [vmem:[%s201 + $0x50] sm:$0xff]
      %v227 = vld [vmem:[%s201 + $0x58] sm:$0xff]
      %v228 = vld [vmem:[%s201 + $0x60] sm:$0xff]
      %v229 = vld [vmem:[%s201 + $0x68] sm:$0xff]
      %v230 = vld [vmem:[%s201 + $0x70] sm:$0xff]
      %v231 = vld [vmem:[%s201 + $0x78] sm:$0xff]
      %v232 = vld [vmem:[%s201 + $0x80] sm:$0xff]
      %v233 = vld [vmem:[%s201 + $0x88] sm:$0xff]
      %v234 = vld [vmem:[%s201 + $0x90] sm:$0xff]
      %v235 = vld [vmem:[%s201 + $0x98] sm:$0xff]
      %v236 = vld [vmem:[%s201 + $0xa0] sm:$0xff]
      %v237 = vld [vmem:[%s201 + $0xa8] sm:$0xff]
      %v238 = vld [vmem:[%s201 + $0xb0] sm:$0xff]
      %v239 = vld [vmem:[%s201 + $0xb8] sm:$0xff]
      %v240 = vld [vmem:[%s201 + $0xc0] sm:$0xff]
      %v241 = vld [vmem:[%s201 + $0xc8] sm:$0xff]
      %v242 = vld [vmem:[%s201 + $0xd0] sm:$0xff]
      %v243 = vld [vmem:[%s201 + $0xd8] sm:$0xff]
      %v244 = vld [vmem:[%s201 + $0xe0] sm:$0xff]
      %v245 = vld [vmem:[%s201 + $0xe8] sm:$0xff]
      %v246 = vld [vmem:[%s201 + $0xf0] sm:$0xff]
      %v247 = vld [vmem:[%s201 + $0xf8] sm:$0xff]
      %v248 = vmul.f32 %v216, %v216
      %v249 = vmul.f32 %v217, %v217
      %v250 = vmul.f32 %v218, %v218
      %v251 = vmul.f32 %v219, %v219
      %v252 = vmul.f32 %v220, %v220
      %v253 = vmul.f32 %v221, %v221
      %v254 = vmul.f32 %v222, %v222
      %v255 = vmul.f32 %v223, %v223
      %v256 = vmul.f32 %v224, %v224
      %v257 = vmul.f32 %v225, %v225
      %v258 = vmul.f32 %v226, %v226
      %v259 = vmul.f32 %v227, %v227
      %v260 = vmul.f32 %v228, %v228
      %v261 = vmul.f32 %v229, %v229
      %v262 = vmul.f32 %v230, %v230
      %v263 = vmul.f32 %v231, %v231
      %v264 = vmul.f32 %v232, %v232
      %v265 = vmul.f32 %v233, %v233
      %v266 = vmul.f32 %v234, %v234
      %v267 = vmul.f32 %v235, %v235
      %v268 = vmul.f32 %v236, %v236
      %v269 = vmul.f32 %v237, %v237
      %v270 = vmul.f32 %v238, %v238
      %v271 = vmul.f32 %v239, %v239
      %v272 = vmul.f32 %v240, %v240
      %v273 = vmul.f32 %v241, %v241
      %v274 = vmul.f32 %v242, %v242
      %v275 = vmul.f32 %v243, %v243
      %v276 = vmul.f32 %v244, %v244
      %v277 = vmul.f32 %v245, %v245
      %v278 = vmul.f32 %v246, %v246
      %v279 = vmul.f32 %v247, %v247
      %vm280 = vcmask 31744
      %v281 = vsel %vm280, %v248, 0.0
      %282 = vadd.xlane.f32.xlu0 %v281
      %v283 = vpop.xlane.xlu0 %282
      %v284 = vsel %vm280, %v249, 0.0
      %285 = vadd.xlane.f32.xlu0 %v284
      %v286 = vpop.xlane.xlu0 %285
      %v287 = vsel %vm280, %v250, 0.0
      %288 = vadd.xlane.f32.xlu0 %v287
      %v289 = vpop.xlane.xlu0 %288
      %v290 = vsel %vm280, %v251, 0.0
      %291 = vadd.xlane.f32.xlu0 %v290
      %v292 = vpop.xlane.xlu0 %291
      %v293 = vsel %vm280, %v252, 0.0
      %294 = vadd.xlane.f32.xlu0 %v293
      %v295 = vpop.xlane.xlu0 %294
      %v296 = vsel %vm280, %v253, 0.0
      %297 = vadd.xlane.f32.xlu0 %v296
      %v298 = vpop.xlane.xlu0 %297
      %v299 = vsel %vm280, %v254, 0.0
      %300 = vadd.xlane.f32.xlu0 %v299
      %v301 = vpop.xlane.xlu0 %300
      %v302 = vsel %vm280, %v255, 0.0
      %303 = vadd.xlane.f32.xlu0 %v302
      %v304 = vpop.xlane.xlu0 %303
      %v305 = vsel %vm280, %v256, 0.0
      %306 = vadd.xlane.f32.xlu0 %v305
      %v307 = vpop.xlane.xlu0 %306
      %v308 = vsel %vm280, %v257, 0.0
      %309 = vadd.xlane.f32.xlu0 %v308
      %v310 = vpop.xlane.xlu0 %309
      %v311 = vsel %vm280, %v258, 0.0
      %312 = vadd.xlane.f32.xlu0 %v311
      %v313 = vpop.xlane.xlu0 %312
      %v314 = vsel %vm280, %v259, 0.0
      %315 = vadd.xlane.f32.xlu0 %v314
      %v316 = vpop.xlane.xlu0 %315
      %v317 = vsel %vm280, %v260, 0.0
      %318 = vadd.xlane.f32.xlu0 %v317
      %v319 = vpop.xlane.xlu0 %318
      %v320 = vsel %vm280, %v261, 0.0
      %321 = vadd.xlane.f32.xlu0 %v320
      %v322 = vpop.xlane.xlu0 %321
      %v323 = vsel %vm280, %v262, 0.0
      %324 = vadd.xlane.f32.xlu0 %v323
      %v325 = vpop.xlane.xlu0 %324
      %v326 = vsel %vm280, %v263, 0.0
      %327 = vadd.xlane.f32.xlu0 %v326
      %v328 = vpop.xlane.xlu0 %327
      %v329 = vsel %vm280, %v264, 0.0
      %330 = vadd.xlane.f32.xlu0 %v329
      %v331 = vpop.xlane.xlu0 %330
      %v332 = vsel %vm280, %v265, 0.0
      %333 = vadd.xlane.f32.xlu0 %v332
      %v334 = vpop.xlane.xlu0 %333
      %v335 = vsel %vm280, %v266, 0.0
      %336 = vadd.xlane.f32.xlu0 %v335
      %v337 = vpop.xlane.xlu0 %336
      %v338 = vsel %vm280, %v267, 0.0
      %339 = vadd.xlane.f32.xlu0 %v338
      %v340 = vpop.xlane.xlu0 %339
      %v341 = vsel %vm280, %v268, 0.0
      %342 = vadd.xlane.f32.xlu0 %v341
      %v343 = vpop.xlane.xlu0 %342
      %v344 = vsel %vm280, %v269, 0.0
      %345 = vadd.xlane.f32.xlu0 %v344
      %v346 = vpop.xlane.xlu0 %345
      %v347 = vsel %vm280, %v270, 0.0
      %348 = vadd.xlane.f32.xlu0 %v347
      %v349 = vpop.xlane.xlu0 %348
      %v350 = vsel %vm280, %v271, 0.0
      %351 = vadd.xlane.f32.xlu0 %v350
      %v352 = vpop.xlane.xlu0 %351
      %v353 = vsel %vm280, %v272, 0.0
      %354 = vadd.xlane.f32.xlu0 %v353
      %v355 = vpop.xlane.xlu0 %354
      %v356 = vsel %vm280, %v273, 0.0
      %357 = vadd.xlane.f32.xlu0 %v356
      %v358 = vpop.xlane.xlu0 %357
      %v359 = vsel %vm280, %v274, 0.0
      %360 = vadd.xlane.f32.xlu0 %v359
      %v361 = vpop.xlane.xlu0 %360
      %v362 = vsel %vm280, %v275, 0.0
      %363 = vadd.xlane.f32.xlu0 %v362
      %v364 = vpop.xlane.xlu0 %363
      %v365 = vsel %vm280, %v276, 0.0
      %366 = vadd.xlane.f32.xlu0 %v365
      %v367 = vpop.xlane.xlu0 %366
      %v368 = vsel %vm280, %v277, 0.0
      %369 = vadd.xlane.f32.xlu0 %v368
      %v370 = vpop.xlane.xlu0 %369
      %v371 = vsel %vm280, %v278, 0.0
      %372 = vadd.xlane.f32.xlu0 %v371
      %v373 = vpop.xlane.xlu0 %372
      %v374 = vsel %vm280, %v279, 0.0
      %375 = vadd.xlane.f32.xlu0 %v374
      %v376 = vpop.xlane.xlu0 %375
      %v377 = vmax.f32 %v283, 1e-24
      %v378 = vmax.f32 %v286, 1e-24
      %v379 = vmax.f32 %v289, 1e-24
      %v380 = vmax.f32 %v292, 1e-24
      %v381 = vmax.f32 %v295, 1e-24
      %v382 = vmax.f32 %v298, 1e-24
      %v383 = vmax.f32 %v301, 1e-24
      %v384 = vmax.f32 %v304, 1e-24
      %v385 = vmax.f32 %v307, 1e-24
      %v386 = vmax.f32 %v310, 1e-24
      %v387 = vmax.f32 %v313, 1e-24
      %v388 = vmax.f32 %v316, 1e-24
      %v389 = vmax.f32 %v319, 1e-24
      %v390 = vmax.f32 %v322, 1e-24
      %v391 = vmax.f32 %v325, 1e-24
      %v392 = vmax.f32 %v328, 1e-24
      %v393 = vmax.f32 %v331, 1e-24
      %v394 = vmax.f32 %v334, 1e-24
      %v395 = vmax.f32 %v337, 1e-24
      %v396 = vmax.f32 %v340, 1e-24
      %v397 = vmax.f32 %v343, 1e-24
      %v398 = vmax.f32 %v346, 1e-24
      %v399 = vmax.f32 %v349, 1e-24
      %v400 = vmax.f32 %v352, 1e-24
      %v401 = vmax.f32 %v355, 1e-24
      %v402 = vmax.f32 %v358, 1e-24
      %v403 = vmax.f32 %v361, 1e-24
      %v404 = vmax.f32 %v364, 1e-24
      %v405 = vmax.f32 %v367, 1e-24
      %v406 = vmax.f32 %v370, 1e-24
      %v407 = vmax.f32 %v373, 1e-24
      %v408 = vmax.f32 %v376, 1e-24
      %v409 = vrsqrt.pop %v377
      %v410 = vrsqrt.pop %v378
      %v411 = vrsqrt.pop %v379
      %v412 = vrsqrt.pop %v380
      %v413 = vrsqrt.pop %v381
      %v414 = vrsqrt.pop %v382
      %v415 = vrsqrt.pop %v383
      %v416 = vrsqrt.pop %v384
      %v417 = vrsqrt.pop %v385
      %v418 = vrsqrt.pop %v386
      %v419 = vrsqrt.pop %v387
      %v420 = vrsqrt.pop %v388
      %v421 = vrsqrt.pop %v389
      %v422 = vrsqrt.pop %v390
      %v423 = vrsqrt.pop %v391
      %v424 = vrsqrt.pop %v392
      %v425 = vrsqrt.pop %v393
      %v426 = vrsqrt.pop %v394
      %v427 = vrsqrt.pop %v395
      %v428 = vrsqrt.pop %v396
      %v429 = vrsqrt.pop %v397
      %v430 = vrsqrt.pop %v398
      %v431 = vrsqrt.pop %v399
      %v432 = vrsqrt.pop %v400
      %v433 = vrsqrt.pop %v401
      %v434 = vrsqrt.pop %v402
      %v435 = vrsqrt.pop %v403
      %v436 = vrsqrt.pop %v404
      %v437 = vrsqrt.pop %v405
      %v438 = vrsqrt.pop %v406
      %v439 = vrsqrt.pop %v407
      %v440 = vrsqrt.pop %v408
      %v441 = vmul.f32 %v216, %v409
      %v442 = vmul.f32 %v217, %v410
      %v443 = vmul.f32 %v218, %v411
      %v444 = vmul.f32 %v219, %v412
      %v445 = vmul.f32 %v220, %v413
      %v446 = vmul.f32 %v221, %v414
      %v447 = vmul.f32 %v222, %v415
      %v448 = vmul.f32 %v223, %v416
      %v449 = vmul.f32 %v224, %v417
      %v450 = vmul.f32 %v225, %v418
      %v451 = vmul.f32 %v226, %v419
      %v452 = vmul.f32 %v227, %v420
      %v453 = vmul.f32 %v228, %v421
      %v454 = vmul.f32 %v229, %v422
      %v455 = vmul.f32 %v230, %v423
      %v456 = vmul.f32 %v231, %v424
      %v457 = vmul.f32 %v232, %v425
      %v458 = vmul.f32 %v233, %v426
      %v459 = vmul.f32 %v234, %v427
      %v460 = vmul.f32 %v235, %v428
      %v461 = vmul.f32 %v236, %v429
      %v462 = vmul.f32 %v237, %v430
      %v463 = vmul.f32 %v238, %v431
      %v464 = vmul.f32 %v239, %v432
      %v465 = vmul.f32 %v240, %v433
      %v466 = vmul.f32 %v241, %v434
      %v467 = vmul.f32 %v242, %v435
      %v468 = vmul.f32 %v243, %v436
      %v469 = vmul.f32 %v244, %v437
      %v470 = vmul.f32 %v245, %v438
      %v471 = vmul.f32 %v246, %v439
      %v472 = vmul.f32 %v247, %v440
      %v473 = vpack.c.bf16 %v442, %v441
      %v474 = vpack.c.bf16 %v444, %v443
      %v475 = vpack.c.bf16 %v446, %v445
      %v476 = vpack.c.bf16 %v448, %v447
      %v477 = vpack.c.bf16 %v450, %v449
      %v478 = vpack.c.bf16 %v452, %v451
      %v479 = vpack.c.bf16 %v454, %v453
      %v480 = vpack.c.bf16 %v456, %v455
      %v481 = vpack.c.bf16 %v458, %v457
      %v482 = vpack.c.bf16 %v460, %v459
      %v483 = vpack.c.bf16 %v462, %v461
      %v484 = vpack.c.bf16 %v464, %v463
      %v485 = vpack.c.bf16 %v466, %v465
      %v486 = vpack.c.bf16 %v468, %v467
      %v487 = vpack.c.bf16 %v470, %v469
      %v488 = vpack.c.bf16 %v472, %v471
      %v489 = vld [vmem:[%s1] sm:$0x3]
      %v490 = vld [vmem:[%s2] sm:$0x1]
      %v492 = vlaneseq
      %v493 = vshrl.u32 %v492, 7
      %v494 = vsub.s32 0, %v493
      %v495 = vrot.slane %v490, %v494
      %v498 = vsel %vm280, %v473, 0
      %v501 = vsel %vm280, %v474, 0
      %v504 = vsel %vm280, %v475, 0
      %v507 = vsel %vm280, %v476, 0
      %v510 = vsel %vm280, %v477, 0
      %v513 = vsel %vm280, %v478, 0
      %v516 = vsel %vm280, %v479, 0
      %v519 = vsel %vm280, %v480, 0
      %v522 = vsel %vm280, %v481, 0
      %v525 = vsel %vm280, %v482, 0
      %v528 = vsel %vm280, %v483, 0
      %v531 = vsel %vm280, %v484, 0
      %v534 = vsel %vm280, %v485, 0
      %v537 = vsel %vm280, %v486, 0
      %v540 = vsel %vm280, %v487, 0
      %v543 = vsel %vm280, %v488, 0
      %vm545 = vcmask 1041408
      %v547 = vsel %vm545, %v489, 0
      %549 = vmatprep.subr.bf16.mxu0 0
      %550 = vmatpush1.bf16.msra.mxu0 %v547
      %551 = vmatprep.subr.bf16.mxu0 0
      %552 = vmatpush1.bf16.msra.mxu0 0
      %553 = vmatprep.subr.bf16.mxu0 0
      %554 = vmatpush1.bf16.msra.mxu0 0
      %555 = vmatprep.subr.bf16.mxu0 0
      %556 = vmatpush1.bf16.msra.mxu0 0
      %557 = vmatprep.subr.bf16.mxu0 0
      %558 = vmatpush1.bf16.msra.mxu0 0
      %559 = vmatprep.subr.bf16.mxu0 0
      %560 = vmatpush1.bf16.msra.mxu0 0
      %561 = vmatprep.subr.bf16.mxu0 0
      %562 = vmatpush1.bf16.msra.mxu0 0
      %563 = vmatprep.subr.bf16.mxu0 0
      %564 = vmatpush1.bf16.msra.mxu0 0
      %565 = vmatprep.subr.bf16.mxu0 0
      %566 = vmatpush1.bf16.msra.mxu0 0
      %567 = vmatprep.subr.bf16.mxu0 0
      %568 = vmatpush1.bf16.msra.mxu0 0
      %569 = vmatprep.subr.bf16.mxu0 0
      %570 = vmatpush1.bf16.msra.mxu0 0
      %571 = vmatprep.subr.bf16.mxu0 0
      %572 = vmatpush1.bf16.msra.mxu0 0
      %573 = vmatprep.subr.bf16.mxu0 0
      %574 = vmatpush1.bf16.msra.mxu0 0
      %575 = vmatprep.subr.bf16.mxu0 0
      %576 = vmatpush1.bf16.msra.mxu0 0
      %577 = vmatprep.subr.bf16.mxu0 0
      %578 = vmatpush1.bf16.msra.mxu0 0
      %579 = vmatprep.subr.bf16.mxu0 0
      %580 = vmatpush1.bf16.msra.mxu0 0
      %581 = vmatprep.mubr.bf16.mxu0 0
      %582 = vmatmul.mubr.bf16.gmra.mrb[0].mxu0 %v498
      %v583 = vpop.f32.mrb[0].mxu0
      %v584 = vadd.f32 %v495, %v583
      %v585 = vpop.f32.mrb[0].mxu0
      %v586 = vpop.f32.mrb[0].mxu0
      %v587 = vadd.f32 %v495, %v586
      %v588 = vpop.f32.mrb[0].mxu0
      %589 = vmatprep.mubr.bf16.mxu0 0
      %590 = vmatmul.mubr.bf16.gmra.mrb[0].mxu0 %v501
      %v591 = vpop.f32.mrb[0].mxu0
      %v592 = vadd.f32 %v495, %v591
      %v593 = vpop.f32.mrb[0].mxu0
      %v594 = vpop.f32.mrb[0].mxu0
      %v595 = vadd.f32 %v495, %v594
      %v596 = vpop.f32.mrb[0].mxu0
      %597 = vmatprep.mubr.bf16.mxu0 0
      %598 = vmatmul.mubr.bf16.gmra.mrb[0].mxu0 %v504
      %v599 = vpop.f32.mrb[0].mxu0
      %v600 = vadd.f32 %v495, %v599
      %v601 = vpop.f32.mrb[0].mxu0
      %v602 = vpop.f32.mrb[0].mxu0
      %v603 = vadd.f32 %v495, %v602
      %v604 = vpop.f32.mrb[0].mxu0
      %605 = vmatprep.mubr.bf16.mxu0 0
      %606 = vmatmul.mubr.bf16.gmra.mrb[0].mxu0 %v507
      %v607 = vpop.f32.mrb[0].mxu0
      %v608 = vadd.f32 %v495, %v607
      %v609 = vpop.f32.mrb[0].mxu0
      %v610 = vpop.f32.mrb[0].mxu0
      %v611 = vadd.f32 %v495, %v610
      %v612 = vpop.f32.mrb[0].mxu0
      %613 = vmatprep.mubr.bf16.mxu0 0
      %614 = vmatmul.mubr.bf16.gmra.mrb[0].mxu0 %v510
      %v615 = vpop.f32.mrb[0].mxu0
      %v616 = vadd.f32 %v495, %v615
      %v617 = vpop.f32.mrb[0].mxu0
      %v618 = vpop.f32.mrb[0].mxu0
      %v619 = vadd.f32 %v495, %v618
      %v620 = vpop.f32.mrb[0].mxu0
      %621 = vmatprep.mubr.bf16.mxu0 0
      %622 = vmatmul.mubr.bf16.gmra.mrb[0].mxu0 %v513
      %v623 = vpop.f32.mrb[0].mxu0
      %v624 = vadd.f32 %v495, %v623
      %v625 = vpop.f32.mrb[0].mxu0
      %v626 = vpop.f32.mrb[0].mxu0
      %v627 = vadd.f32 %v495, %v626
      %v628 = vpop.f32.mrb[0].mxu0
      %629 = vmatprep.mubr.bf16.mxu0 0
      %630 = vmatmul.mubr.bf16.gmra.mrb[0].mxu0 %v516
      %v631 = vpop.f32.mrb[0].mxu0
      %v632 = vadd.f32 %v495, %v631
      %v633 = vpop.f32.mrb[0].mxu0
      %v634 = vpop.f32.mrb[0].mxu0
      %v635 = vadd.f32 %v495, %v634
      %v636 = vpop.f32.mrb[0].mxu0
      %637 = vmatprep.mubr.bf16.mxu0 0
      %638 = vmatmul.mubr.bf16.gmra.mrb[0].mxu0 %v519
      %v639 = vpop.f32.mrb[0].mxu0
      %v640 = vadd.f32 %v495, %v639
      %v641 = vpop.f32.mrb[0].mxu0
      %v642 = vpop.f32.mrb[0].mxu0
      %v643 = vadd.f32 %v495, %v642
      %v644 = vpop.f32.mrb[0].mxu0
      %645 = vmatprep.mubr.bf16.mxu0 0
      %646 = vmatmul.mubr.bf16.gmra.mrb[0].mxu0 %v522
      %v647 = vpop.f32.mrb[0].mxu0
      %v648 = vadd.f32 %v495, %v647
      %v649 = vpop.f32.mrb[0].mxu0
      %v650 = vpop.f32.mrb[0].mxu0
      %v651 = vadd.f32 %v495, %v650
      %v652 = vpop.f32.mrb[0].mxu0
      %653 = vmatprep.mubr.bf16.mxu0 0
      %654 = vmatmul.mubr.bf16.gmra.mrb[0].mxu0 %v525
      %v655 = vpop.f32.mrb[0].mxu0
      %v656 = vadd.f32 %v495, %v655
      %v657 = vpop.f32.mrb[0].mxu0
      %v658 = vpop.f32.mrb[0].mxu0
      %v659 = vadd.f32 %v495, %v658
      %v660 = vpop.f32.mrb[0].mxu0
      %661 = vmatprep.mubr.bf16.mxu0 0
      %662 = vmatmul.mubr.bf16.gmra.mrb[0].mxu0 %v528
      %v663 = vpop.f32.mrb[0].mxu0
      %v664 = vadd.f32 %v495, %v663
      %v665 = vpop.f32.mrb[0].mxu0
      %v666 = vpop.f32.mrb[0].mxu0
      %v667 = vadd.f32 %v495, %v666
      %v668 = vpop.f32.mrb[0].mxu0
      %669 = vmatprep.mubr.bf16.mxu0 0
      %670 = vmatmul.mubr.bf16.gmra.mrb[0].mxu0 %v531
      %v671 = vpop.f32.mrb[0].mxu0
      %v672 = vadd.f32 %v495, %v671
      %v673 = vpop.f32.mrb[0].mxu0
      %v674 = vpop.f32.mrb[0].mxu0
      %v675 = vadd.f32 %v495, %v674
      %v676 = vpop.f32.mrb[0].mxu0
      %677 = vmatprep.mubr.bf16.mxu0 0
      %678 = vmatmul.mubr.bf16.gmra.mrb[0].mxu0 %v534
      %v679 = vpop.f32.mrb[0].mxu0
      %v680 = vadd.f32 %v495, %v679
      %v681 = vpop.f32.mrb[0].mxu0
      %v682 = vpop.f32.mrb[0].mxu0
      %v683 = vadd.f32 %v495, %v682
      %v684 = vpop.f32.mrb[0].mxu0
      %685 = vmatprep.mubr.bf16.mxu0 0
      %686 = vmatmul.mubr.bf16.gmra.mrb[0].mxu0 %v537
      %v687 = vpop.f32.mrb[0].mxu0
      %v688 = vadd.f32 %v495, %v687
      %v689 = vpop.f32.mrb[0].mxu0
      %v690 = vpop.f32.mrb[0].mxu0
      %v691 = vadd.f32 %v495, %v690
      %v692 = vpop.f32.mrb[0].mxu0
      %693 = vmatprep.mubr.bf16.mxu0 0
      %694 = vmatmul.mubr.bf16.gmra.mrb[0].mxu0 %v540
      %v695 = vpop.f32.mrb[0].mxu0
      %v696 = vadd.f32 %v495, %v695
      %v697 = vpop.f32.mrb[0].mxu0
      %v698 = vpop.f32.mrb[0].mxu0
      %v699 = vadd.f32 %v495, %v698
      %v700 = vpop.f32.mrb[0].mxu0
      %701 = vmatprep.mubr.bf16.mxu0 0
      %702 = vmatmul.mubr.bf16.gmra.mrb[0].mxu0 %v543
      %v703 = vpop.f32.mrb[0].mxu0
      %v704 = vadd.f32 %v495, %v703
      %v705 = vpop.f32.mrb[0].mxu0
      %v706 = vpop.f32.mrb[0].mxu0
      %v707 = vadd.f32 %v495, %v706
      %v708 = vpop.f32.mrb[0].mxu0
      %709 = vdwg.mxu0
      %v710 = vpack.c.bf16 %v587, %v584
      %v711 = vpack.c.bf16 %v595, %v592
      %v712 = vpack.c.bf16 %v603, %v600
      %v713 = vpack.c.bf16 %v611, %v608
      %v714 = vpack.c.bf16 %v619, %v616
      %v715 = vpack.c.bf16 %v627, %v624
      %v716 = vpack.c.bf16 %v635, %v632
      %v717 = vpack.c.bf16 %v643, %v640
      %v718 = vpack.c.bf16 %v651, %v648
      %v719 = vpack.c.bf16 %v659, %v656
      %v720 = vpack.c.bf16 %v667, %v664
      %v721 = vpack.c.bf16 %v675, %v672
      %v722 = vpack.c.bf16 %v683, %v680
      %v723 = vpack.c.bf16 %v691, %v688
      %v724 = vpack.c.bf16 %v699, %v696
      %v725 = vpack.c.bf16 %v707, %v704
      %v742 = vunpack.c.l.b16 %v710
      %v743 = vunpack.c.h.b16 %v710
      %v744 = vunpack.c.l.b16 %v711
      %v745 = vunpack.c.h.b16 %v711
      %v746 = vunpack.c.l.b16 %v712
      %v747 = vunpack.c.h.b16 %v712
      %v748 = vunpack.c.l.b16 %v713
      %v749 = vunpack.c.h.b16 %v713
      %v750 = vunpack.c.l.b16 %v714
      %v751 = vunpack.c.h.b16 %v714
      %v752 = vunpack.c.l.b16 %v715
      %v753 = vunpack.c.h.b16 %v715
      %v754 = vunpack.c.l.b16 %v716
      %v755 = vunpack.c.h.b16 %v716
      %v756 = vunpack.c.l.b16 %v717
      %v757 = vunpack.c.h.b16 %v717
      %v758 = vunpack.c.l.b16 %v718
      %v759 = vunpack.c.h.b16 %v718
      %v760 = vunpack.c.l.b16 %v719
      %v761 = vunpack.c.h.b16 %v719
      %v762 = vunpack.c.l.b16 %v720
      %v763 = vunpack.c.h.b16 %v720
      %v764 = vunpack.c.l.b16 %v721
      %v765 = vunpack.c.h.b16 %v721
      %v766 = vunpack.c.l.b16 %v722
      %v767 = vunpack.c.h.b16 %v722
      %v768 = vunpack.c.l.b16 %v723
      %v769 = vunpack.c.h.b16 %v723
      %v770 = vunpack.c.l.b16 %v724
      %v771 = vunpack.c.h.b16 %v724
      %v772 = vunpack.c.l.b16 %v725
      %v773 = vunpack.c.h.b16 %v725
      %v774 = vpack.c.b16 %v742, %v742
      %v775 = vpack.c.b16 %v743, %v743
      %v776 = vpack.c.b16 %v744, %v744
      %v777 = vpack.c.b16 %v745, %v745
      %v778 = vpack.c.b16 %v746, %v746
      %v779 = vpack.c.b16 %v747, %v747
      %v780 = vpack.c.b16 %v748, %v748
      %v781 = vpack.c.b16 %v749, %v749
      %v782 = vpack.c.b16 %v750, %v750
      %v783 = vpack.c.b16 %v751, %v751
      %v784 = vpack.c.b16 %v752, %v752
      %v785 = vpack.c.b16 %v753, %v753
      %v786 = vpack.c.b16 %v754, %v754
      %v787 = vpack.c.b16 %v755, %v755
      %v788 = vpack.c.b16 %v756, %v756
      %v789 = vpack.c.b16 %v757, %v757
      %v790 = vpack.c.b16 %v758, %v758
      %v791 = vpack.c.b16 %v759, %v759
      %v792 = vpack.c.b16 %v760, %v760
      %v793 = vpack.c.b16 %v761, %v761
      %v794 = vpack.c.b16 %v762, %v762
      %v795 = vpack.c.b16 %v763, %v763
      %v796 = vpack.c.b16 %v764, %v764
      %v797 = vpack.c.b16 %v765, %v765
      %v798 = vpack.c.b16 %v766, %v766
      %v799 = vpack.c.b16 %v767, %v767
      %v800 = vpack.c.b16 %v768, %v768
      %v801 = vpack.c.b16 %v769, %v769
      %v802 = vpack.c.b16 %v770, %v770
      %v803 = vpack.c.b16 %v771, %v771
      %v804 = vpack.c.b16 %v772, %v772
      %v805 = vpack.c.b16 %v773, %v773
      %vm838 = vcmask 257024
      %839 = vst.msk [vmem:[%s207] sm:$0xf] %vm838, %v774
      %840 = vst.msk [vmem:[%s207 + $0x4] sm:$0xf] %vm838, %v775
      %841 = vst.msk [vmem:[%s207 + $0x8] sm:$0xf] %vm838, %v776
      %842 = vst.msk [vmem:[%s207 + $0xc] sm:$0xf] %vm838, %v777
      %843 = vst.msk [vmem:[%s207 + $0x10] sm:$0xf] %vm838, %v778
      %844 = vst.msk [vmem:[%s207 + $0x14] sm:$0xf] %vm838, %v779
      %845 = vst.msk [vmem:[%s207 + $0x18] sm:$0xf] %vm838, %v780
      %846 = vst.msk [vmem:[%s207 + $0x1c] sm:$0xf] %vm838, %v781
      %847 = vst.msk [vmem:[%s207 + $0x20] sm:$0xf] %vm838, %v782
      %848 = vst.msk [vmem:[%s207 + $0x24] sm:$0xf] %vm838, %v783
      %849 = vst.msk [vmem:[%s207 + $0x28] sm:$0xf] %vm838, %v784
      %850 = vst.msk [vmem:[%s207 + $0x2c] sm:$0xf] %vm838, %v785
      %851 = vst.msk [vmem:[%s207 + $0x30] sm:$0xf] %vm838, %v786
      %852 = vst.msk [vmem:[%s207 + $0x34] sm:$0xf] %vm838, %v787
      %853 = vst.msk [vmem:[%s207 + $0x38] sm:$0xf] %vm838, %v788
      %854 = vst.msk [vmem:[%s207 + $0x3c] sm:$0xf] %vm838, %v789
      %855 = vst.msk [vmem:[%s207 + $0x40] sm:$0xf] %vm838, %v790
      %856 = vst.msk [vmem:[%s207 + $0x44] sm:$0xf] %vm838, %v791
      %857 = vst.msk [vmem:[%s207 + $0x48] sm:$0xf] %vm838, %v792
      %858 = vst.msk [vmem:[%s207 + $0x4c] sm:$0xf] %vm838, %v793
      %859 = vst.msk [vmem:[%s207 + $0x50] sm:$0xf] %vm838, %v794
      %860 = vst.msk [vmem:[%s207 + $0x54] sm:$0xf] %vm838, %v795
      %861 = vst.msk [vmem:[%s207 + $0x58] sm:$0xf] %vm838, %v796
      %862 = vst.msk [vmem:[%s207 + $0x5c] sm:$0xf] %vm838, %v797
      %863 = vst.msk [vmem:[%s207 + $0x60] sm:$0xf] %vm838, %v798
      %864 = vst.msk [vmem:[%s207 + $0x64] sm:$0xf] %vm838, %v799
      %865 = vst.msk [vmem:[%s207 + $0x68] sm:$0xf] %vm838, %v800
      %866 = vst.msk [vmem:[%s207 + $0x6c] sm:$0xf] %vm838, %v801
      %867 = vst.msk [vmem:[%s207 + $0x70] sm:$0xf] %vm838, %v802
      %868 = vst.msk [vmem:[%s207 + $0x74] sm:$0xf] %vm838, %v803
      %869 = vst.msk [vmem:[%s207 + $0x78] sm:$0xf] %vm838, %v804
      %870 = vst.msk [vmem:[%s207 + $0x7c] sm:$0xf] %vm838, %v805
      %871 = vrot.lane.b32.xlu0 %v774, 96
      %v872 = vpop.permute.xlu0 %871
      %873 = vrot.lane.b32.xlu0 %v775, 96
      %v874 = vpop.permute.xlu0 %873
      %875 = vrot.lane.b32.xlu0 %v776, 96
      %v876 = vpop.permute.xlu0 %875
      %877 = vrot.lane.b32.xlu0 %v777, 96
      %v878 = vpop.permute.xlu0 %877
      %879 = vrot.lane.b32.xlu0 %v778, 96
      %v880 = vpop.permute.xlu0 %879
      %881 = vrot.lane.b32.xlu0 %v779, 96
      %v882 = vpop.permute.xlu0 %881
      %883 = vrot.lane.b32.xlu0 %v780, 96
      %v884 = vpop.permute.xlu0 %883
      %885 = vrot.lane.b32.xlu0 %v781, 96
      %v886 = vpop.permute.xlu0 %885
      %887 = vrot.lane.b32.xlu0 %v782, 96
      %v888 = vpop.permute.xlu0 %887
      %889 = vrot.lane.b32.xlu0 %v783, 96
      %v890 = vpop.permute.xlu0 %889
      %891 = vrot.lane.b32.xlu0 %v784, 96
      %v892 = vpop.permute.xlu0 %891
      %893 = vrot.lane.b32.xlu0 %v785, 96
      %v894 = vpop.permute.xlu0 %893
      %895 = vrot.lane.b32.xlu0 %v786, 96
      %v896 = vpop.permute.xlu0 %895
      %897 = vrot.lane.b32.xlu0 %v787, 96
      %v898 = vpop.permute.xlu0 %897
      %899 = vrot.lane.b32.xlu0 %v788, 96
      %v900 = vpop.permute.xlu0 %899
      %901 = vrot.lane.b32.xlu0 %v789, 96
      %v902 = vpop.permute.xlu0 %901
      %903 = vrot.lane.b32.xlu0 %v790, 96
      %v904 = vpop.permute.xlu0 %903
      %905 = vrot.lane.b32.xlu0 %v791, 96
      %v906 = vpop.permute.xlu0 %905
      %907 = vrot.lane.b32.xlu0 %v792, 96
      %v908 = vpop.permute.xlu0 %907
      %909 = vrot.lane.b32.xlu0 %v793, 96
      %v910 = vpop.permute.xlu0 %909
      %911 = vrot.lane.b32.xlu0 %v794, 96
      %v912 = vpop.permute.xlu0 %911
      %913 = vrot.lane.b32.xlu0 %v795, 96
      %v914 = vpop.permute.xlu0 %913
      %915 = vrot.lane.b32.xlu0 %v796, 96
      %v916 = vpop.permute.xlu0 %915
      %917 = vrot.lane.b32.xlu0 %v797, 96
      %v918 = vpop.permute.xlu0 %917
      %919 = vrot.lane.b32.xlu0 %v798, 96
      %v920 = vpop.permute.xlu0 %919
      %921 = vrot.lane.b32.xlu0 %v799, 96
      %v922 = vpop.permute.xlu0 %921
      %923 = vrot.lane.b32.xlu0 %v800, 96
      %v924 = vpop.permute.xlu0 %923
      %925 = vrot.lane.b32.xlu0 %v801, 96
      %v926 = vpop.permute.xlu0 %925
      %927 = vrot.lane.b32.xlu0 %v802, 96
      %v928 = vpop.permute.xlu0 %927
      %929 = vrot.lane.b32.xlu0 %v803, 96
      %v930 = vpop.permute.xlu0 %929
      %931 = vrot.lane.b32.xlu0 %v804, 96
      %v932 = vpop.permute.xlu0 %931
      %933 = vrot.lane.b32.xlu0 %v805, 96
      %v934 = vpop.permute.xlu0 %933
      %vm967 = vcmask 519168
      %968 = vst.msk [vmem:[%s213] sm:$0xf] %vm967, %v872
      %969 = vst.msk [vmem:[%s213 + $0x4] sm:$0xf] %vm967, %v874
      %970 = vst.msk [vmem:[%s213 + $0x8] sm:$0xf] %vm967, %v876
      %971 = vst.msk [vmem:[%s213 + $0xc] sm:$0xf] %vm967, %v878
      %972 = vst.msk [vmem:[%s213 + $0x10] sm:$0xf] %vm967, %v880
      %973 = vst.msk [vmem:[%s213 + $0x14] sm:$0xf] %vm967, %v882
      %974 = vst.msk [vmem:[%s213 + $0x18] sm:$0xf] %vm967, %v884
      %975 = vst.msk [vmem:[%s213 + $0x1c] sm:$0xf] %vm967, %v886
      %976 = vst.msk [vmem:[%s213 + $0x20] sm:$0xf] %vm967, %v888
      %977 = vst.msk [vmem:[%s213 + $0x24] sm:$0xf] %vm967, %v890
      %978 = vst.msk [vmem:[%s213 + $0x28] sm:$0xf] %vm967, %v892
      %979 = vst.msk [vmem:[%s213 + $0x2c] sm:$0xf] %vm967, %v894
      %980 = vst.msk [vmem:[%s213 + $0x30] sm:$0xf] %vm967, %v896
      %981 = vst.msk [vmem:[%s213 + $0x34] sm:$0xf] %vm967, %v898
      %982 = vst.msk [vmem:[%s213 + $0x38] sm:$0xf] %vm967, %v900
      %983 = vst.msk [vmem:[%s213 + $0x3c] sm:$0xf] %vm967, %v902
      %984 = vst.msk [vmem:[%s213 + $0x40] sm:$0xf] %vm967, %v904
      %985 = vst.msk [vmem:[%s213 + $0x44] sm:$0xf] %vm967, %v906
      %986 = vst.msk [vmem:[%s213 + $0x48] sm:$0xf] %vm967, %v908
      %987 = vst.msk [vmem:[%s213 + $0x4c] sm:$0xf] %vm967, %v910
      %988 = vst.msk [vmem:[%s213 + $0x50] sm:$0xf] %vm967, %v912
      %989 = vst.msk [vmem:[%s213 + $0x54] sm:$0xf] %vm967, %v914
      %990 = vst.msk [vmem:[%s213 + $0x58] sm:$0xf] %vm967, %v916
      %991 = vst.msk [vmem:[%s213 + $0x5c] sm:$0xf] %vm967, %v918
      %992 = vst.msk [vmem:[%s213 + $0x60] sm:$0xf] %vm967, %v920
      %993 = vst.msk [vmem:[%s213 + $0x64] sm:$0xf] %vm967, %v922
      %994 = vst.msk [vmem:[%s213 + $0x68] sm:$0xf] %vm967, %v924
      %995 = vst.msk [vmem:[%s213 + $0x6c] sm:$0xf] %vm967, %v926
      %996 = vst.msk [vmem:[%s213 + $0x70] sm:$0xf] %vm967, %v928
      %997 = vst.msk [vmem:[%s213 + $0x74] sm:$0xf] %vm967, %v930
      %998 = vst.msk [vmem:[%s213 + $0x78] sm:$0xf] %vm967, %v932
      %999 = vst.msk [vmem:[%s213 + $0x7c] sm:$0xf] %vm967, %v934
      %s1000 = smul.u32 32, %s16
      %p1001 = scmp.lt.s32.totalorder %s1000, 63
      %s1002 = scalar_select %p1001, %s1000, 63
      %s1003 = smul.addr %s1002, 4
      %s1004 = scalar_lea.vmem %s3, %s1003
      %s1005 = smul.u32 32, %s16
      %p1006 = scmp.lt.s32.totalorder %s1005, 63
      %s1007 = scalar_select %p1006, %s1005, 63
      %s1008 = smul.addr %s1007, 4
      %s1009 = scalar_lea.vmem %s4, %s1008
      // Predicated region
      $region33: #{tpu_custom_call.1} parent=31 // pred_check
        %p1010 = pneg %p102
      $region34: #{tpu_custom_call.1} parent=31 // pred_check_branch
        %1012 = sbr.rel (%p1010) target = $region36
      $region35: #{tpu_custom_call.1} parent=31 // pred_region
        %s1013 = smul.u32 32, %s16
      $region36: #{tpu_custom_call.1} parent=31 // pred_fallthru
        _
      // Predicated region
      $region37: #{tpu_custom_call.1} parent=31 // pred_check
        %p1014 = pneg %p128
      $region38: #{tpu_custom_call.1} parent=31 // pred_check_branch
        %1016 = sbr.rel (%p1014) target = $region40
      $region39: #{tpu_custom_call.1} parent=31 // pred_region
        %s1017 = smul.u32 32, %s16
      $region40: #{tpu_custom_call.1} parent=31 // pred_fallthru
        _
    $region32: #{tpu_custom_call.1} parent=5 // pred_fallthru
      _
    %p1018 = scmp.le.s32.totalorder 2, %s11
    // Predicated region
    $region41: #{tpu_custom_call.1} parent=5 // pred_check
      %p1019 = pneg %p1018
    $region42: #{tpu_custom_call.1} parent=5 // pred_check_branch
      %1021 = sbr.rel (%p1019) target = $region44
    $region43: #{tpu_custom_call.1} parent=5 // pred_region
      %s1022 = ssub.s32 %s11, 2
      // Predicated region
      $region45: #{tpu_custom_call.1} parent=43 // pred_check
        %p1023 = pneg %p108
      $region46: #{tpu_custom_call.1} parent=43 // pred_check_branch
        %1025 = sbr.rel (%p1023) target = $region48
      $region47: #{tpu_custom_call.1} parent=43 // pred_region
        %s1026 = smul.u32 32, %s17
        %p1027 = scmp.lt.s32.totalorder %s1026, 63
        %s1028 = scalar_select %p1027, %s1026, 63
        %s1029 = smul.addr %s1028, 4
        %s1030 = scalar_lea.vmem %s3, %s1029
      $region48: #{tpu_custom_call.1} parent=43 // pred_fallthru
        _
      // Predicated region
      $region49: #{tpu_custom_call.1} parent=43 // pred_check
        %p1031 = pneg %p134
      $region50: #{tpu_custom_call.1} parent=43 // pred_check_branch
        %1033 = sbr.rel (%p1031) target = $region52
      $region51: #{tpu_custom_call.1} parent=43 // pred_region
        %s1034 = smul.u32 32, %s17
        %p1035 = scmp.lt.s32.totalorder %s1034, 63
        %s1036 = scalar_select %p1035, %s1034, 63
        %s1037 = smul.addr %s1036, 4
        %s1038 = scalar_lea.vmem %s4, %s1037
      $region52: #{tpu_custom_call.1} parent=43 // pred_fallthru
        _
    $region44: #{tpu_custom_call.1} parent=5 // pred_fallthru
      _
  $region6: #{tpu_custom_call.1} parent=0 // loop_footer
    %s15 = sadd.s32 1, %s11
  $region7: #{tpu_custom_call.1} parent=0 // loop_footer_branch
    %10 = sbr.rel target = $region3
  $region8: #{tpu_custom_call.1} parent=0 // loop_exit
    _

</llo_original>
